<compile_context>
chip_gen: v7x
topology: tpu7x:2x2x1
jax: 0.10.0
libtpu: 0.0.40
codegen_flags: <defaults>
</compile_context>

<pallas_src>
import functools

import jax
import jax.numpy as jnp
from jax import lax
from jax.experimental import pallas as pl
from jax.experimental.pallas import tpu as pltpu


def _vmem_specs(n):
    return [pl.BlockSpec(memory_space=pltpu.MemorySpace.VMEM) for _ in range(n)]


# ----------------------------------------------------------------------------
# Kernel 1: MoESelect — GAP -> Flatten -> Linear -> Softmax (the original module).
# Also used (inline) as the per-step gate of the fused DNBlock kernel below.
# ----------------------------------------------------------------------------
def moe_select_kernel(x_ref, gw_ref, gb_ref, o_ref):
    B, H, W, C = x_ref.shape
    pooled = jnp.sum(x_ref[...].reshape(B, H * W, C), axis=1) * (1.0 / float(H * W))
    logits = jnp.dot(pooled, gw_ref[...], preferred_element_type=jnp.float32) + gb_ref[...]
    logits = logits - jnp.max(logits, axis=-1, keepdims=True)
    eg = jnp.exp(logits)
    o_ref[...] = eg / jnp.sum(eg, axis=-1, keepdims=True)


def moe_select(x_nchw, gw, gb):
    x = jnp.transpose(x_nchw, (0, 2, 3, 1))       # NCHW -> NHWC
    B, H, W, C = x.shape
    E = gw.shape[-1]
    return pl.pallas_call(
        moe_select_kernel,
        out_shape=jax.ShapeDtypeStruct((B, E), jnp.float32),
        in_specs=_vmem_specs(3),
        out_specs=pl.BlockSpec(memory_space=pltpu.MemorySpace.VMEM),
    )(x, gw, gb)


# ----------------------------------------------------------------------------
# Kernel 2: fused DNBlock.  One-time init:
#   cache = ReLU(conv3x3(x) + b0)                 (init conv: single K=9*Cin f32 dot)
# then per recursion step (all state resident in VMEM, early exit via SMEM flag):
#   gates    = softmax(Linear(GAP(cache)))        (MoESelect)
#   expert_e = ReLU(BN(conv3x3_e(cache)))         (all E experts: ONE bf16 MXU dot,
#                                                  BN scale pre-folded into weights)
#   combined = sum_e gates[:, e] * expert_e
#   exit_p   = sigmoid(Linear(GAP(combined)))     (exit gate, exact sigmoid)
# The resident cache lives in out_ref, so the final activation is written to HBM once.
# ----------------------------------------------------------------------------
def dnblock_kernel(xp_ref, w0_ref, b0_ref, we_ref, shift_ref,
                   gw_ref, gb_ref, ew_ref, eb_ref,
                   out_ref, exit_ref,
                   cols0_s, cols_s, pooled_s, done_s,
                   *, max_recursions):
    B, Hp, Wp, Cin = xp_ref.shape
    H, W = Hp - 2, Wp - 2
    C = out_ref.shape[-1]
    M = B * H * W
    HW = H * W
    E = gw_ref.shape[1]
    inv_hw = 1.0 / float(HW)

    # -------- one-time init: init conv + carried GAP + zeroed im2col slab --------
    t = 0
    for ky in range(3):
        for kx in range(3):
            cols0_s[:, t * Cin:(t + 1) * Cin] = (
                xp_ref[:, ky:ky + H, kx:kx + W, :].reshape(M, Cin))
            t += 1
    cache0 = jnp.maximum(
        jnp.dot(cols0_s[...], w0_ref[...], preferred_element_type=jnp.float32)
        + b0_ref[...], 0.0)                                              # (M, C)
    out_ref[...] = cache0.reshape(B, H, W, C)        # resident cache = output ref
    pooled_s[...] = jnp.sum(cache0.reshape(B, HW, C), axis=1) * inv_hw

    # Zero the bf16 im2col slab ONCE: per-step writes only touch in-bounds regions,
    # so each tap's out-of-range boundary strip stays zero for the whole recursion.
    cols_s[...] = jnp.zeros(cols_s.shape, cols_s.dtype)
    done_s[0] = jnp.float32(0.0)                     # min(exit_p) of last executed step
    exit_ref[...] = jnp.zeros(exit_ref.shape, exit_ref.dtype)

    def step_body(step, carry):
        @pl.when(done_s[0] <= 0.5)       # continue only while NOT all(exit_p > 0.5)
        def _():
            # --- MoESelect gate: carried GAP -> linear -> softmax (exact norm) ---
            pooled = pooled_s[...]                                       # (B, C)
            logits = jnp.dot(pooled, gw_ref[...],
                             preferred_element_type=jnp.float32) + gb_ref[...]
            logits = logits - jnp.max(logits, axis=-1, keepdims=True)
            eg = jnp.exp(logits)
            gates = eg / jnp.sum(eg, axis=-1, keepdims=True)             # (B, E)

            # --- 9 taps read from the unpadded resident cache, stored as bf16 ---
            tt = 0
            for ky in range(3):
                oy0 = max(0, 1 - ky)
                oy1 = min(H, H + 1 - ky)
                iy0 = oy0 + ky - 1
                hs = oy1 - oy0
                for kx in range(3):
                    ox0 = max(0, 1 - kx)
                    ox1 = min(W, W + 1 - kx)
                    ix0 = ox0 + kx - 1
                    ws = ox1 - ox0
                    cols_s[:, oy0:oy1, ox0:ox1, tt * C:(tt + 1) * C] = (
                        out_ref[:, iy0:iy0 + hs, ix0:ix0 + ws, :].astype(jnp.bfloat16))
                    tt += 1

            # --- all experts in ONE lane-dense bf16 MXU dot (BN scale pre-folded) ---
            y = jnp.dot(cols_s[...].reshape(M, 9 * C), we_ref[...],
                        preferred_element_type=jnp.float32)              # (M, Np=128)
            y = jnp.maximum(y + shift_ref[...], 0.0)                     # folded BN + ReLU
            y = y.reshape(B, HW, we_ref.shape[1])

            # --- gate-weighted combine over experts (pad columns never read) ---
            combined = gates[:, 0:1].reshape(B, 1, 1) * y[:, :, 0:C]
            for e in range(1, E):
                combined = combined + (gates[:, e:e + 1].reshape(B, 1, 1)
                                       * y[:, :, e * C:(e + 1) * C])

            # --- GAP of combined: exit gate now, MoE gate of the next step ---
            pooled_new = jnp.sum(combined, axis=1) * inv_hw              # (B, C)
            el = jnp.dot(pooled_new, ew_ref[...],
                         preferred_element_type=jnp.float32) + eb_ref[...]
            exit_p = 1.0 / (1.0 + jnp.exp(-el))                          # exact sigmoid

            # --- write back state (aligned full-block stores) ---
            out_ref[...] = combined.reshape(B, H, W, C)
            pooled_s[...] = pooled_new
            exit_ref[...] = exit_p
            done_s[0] = jnp.min(exit_p)     # all(exit_p > 0.5)  <=>  min(exit_p) > 0.5
        return carry

    lax.fori_loop(0, max_recursions, step_body, 0)


# ----------------------------------------------------------------------------
# Wrappers
# ----------------------------------------------------------------------------
def dnblock_pallas(x_nhwc, params, max_recursions):
    B, H, W, Cin = x_nhwc.shape
    C = params["w0"].shape[-1]
    E = params["we"].shape[0]
    Np = 128 * ((E * C + 127) // 128)             # lane-dense padded expert width

    xp = jnp.pad(x_nhwc, ((0, 0), (1, 1), (1, 1), (0, 0)))     # one-time pad (init conv)
    w0_packed = params["w0"].reshape(9 * Cin, C)

    # Pack all experts into the N dim of one matmul, fold BN scale in f32, cast bf16,
    # and pad N to a multiple of 128 (gates never read the pad columns).
    we_packed = jnp.transpose(params["we"], (1, 2, 3, 0, 4)).reshape(9 * C, E * C)
    we_packed = (we_packed * params["scale"].reshape(E * C)[None, :]).astype(jnp.bfloat16)
    we_packed = jnp.pad(we_packed, ((0, 0), (0, Np - E * C)))
    shift = jnp.pad(params["shift"].reshape(1, E * C), ((0, 0), (0, Np - E * C)))

    kernel = functools.partial(dnblock_kernel, max_recursions=max_recursions)
    out, exit_p = pl.pallas_call(
        kernel,
        out_shape=(jax.ShapeDtypeStruct((B, H, W, C), jnp.float32),
                   jax.ShapeDtypeStruct((B, 1), jnp.float32)),
        in_specs=_vmem_specs(9),
        out_specs=tuple(_vmem_specs(2)),
        scratch_shapes=[pltpu.VMEM((B * H * W, 9 * Cin), jnp.float32),   # init im2col (1x)
                        pltpu.VMEM((B, H, W, 9 * C), jnp.bfloat16),      # per-step im2col
                        pltpu.VMEM((B, C), jnp.float32),                 # carried GAP
                        pltpu.SMEM((1,), jnp.float32)],                  # early-exit flag
    )(xp, w0_packed, params["b0"], we_packed, shift,
      params["gw"], params["gb"], params["ew"], params["eb"])
    return out, exit_p[:, 0]


@functools.partial(jax.jit, static_argnames=("max_recursions",))
def dnblock_forward(x_nchw, params, max_recursions=32):
    x = jnp.transpose(x_nchw, (0, 2, 3, 1))                    # NCHW -> NHWC
    out, _ = dnblock_pallas(x, params, max_recursions)         # fused conv+recursion+exit
    return jnp.transpose(out, (0, 3, 1, 2))                    # NHWC -> NCHW


# ----------------------------------------------------------------------------
# Deterministic parameter construction (BN folded into per-channel scale/shift)
# ----------------------------------------------------------------------------
def make_params(key, cin, cout, num_experts):
    ks = jax.random.split(key, 12)
    std0 = 1.0 / jnp.sqrt(9.0 * cin)
    stde = 1.0 / jnp.sqrt(9.0 * cout)
    w0 = (jax.random.normal(ks[0], (3, 3, cin, cout)) * std0).astype(jnp.float32)
    b0 = (jax.random.normal(ks[1], (1, cout)) * 0.05).astype(jnp.float32)
    we = (jax.random.normal(ks[2], (num_experts, 3, 3, cout, cout)) * stde).astype(jnp.float32)
    be = jax.random.normal(ks[3], (num_experts, cout)) * 0.05
    gamma = 1.0 + 0.1 * jax.random.normal(ks[4], (num_experts, cout))
    beta = 0.1 * jax.random.normal(ks[5], (num_experts, cout))
    rmean = 0.1 * jax.random.normal(ks[6], (num_experts, cout))
    rvar = 1.0 + 0.1 * jnp.abs(jax.random.normal(ks[7], (num_experts, cout)))
    inv_std = 1.0 / jnp.sqrt(rvar + 1e-5)
    scale = (gamma * inv_std).reshape(num_experts, 1, cout).astype(jnp.float32)
    shift = (beta + (be - rmean) * gamma * inv_std).reshape(num_experts, 1, cout).astype(jnp.float32)
    gw = (jax.random.normal(ks[8], (cout, num_experts)) / jnp.sqrt(cout)).astype(jnp.float32)
    gb = (jax.random.normal(ks[9], (1, num_experts)) * 0.05).astype(jnp.float32)
    ew = (jax.random.normal(ks[10], (cout, 1)) / jnp.sqrt(cout)).astype(jnp.float32)
    eb = (jax.random.normal(ks[11], (1, 1)) * 0.05).astype(jnp.float32)
    return dict(w0=w0, b0=b0, we=we, scale=scale, shift=shift,
                gw=gw, gb=gb, ew=ew, eb=eb)


# ----------------------------------------------------------------------------
# Pure-JAX references (correctness checks)
# ----------------------------------------------------------------------------
def _ref_conv(x, w):
    return lax.conv_general_dilated(
        x, w, (1, 1), "SAME",
        dimension_numbers=("NHWC", "HWIO", "NHWC"),
        precision=lax.Precision.HIGHEST)


def _ref_step(cache, params):
    E = params["we"].shape[0]
    pooled = jnp.mean(cache, axis=(1, 2))
    gates = jax.nn.softmax(
        jnp.dot(pooled, params["gw"], precision=lax.Precision.HIGHEST) + params["gb"],
        axis=-1)
    outs = []
    for e in range(E):
        y = _ref_conv(cache, params["we"][e])
        y = jnp.maximum(y * params["scale"][e].reshape(1, 1, 1, -1)
                        + params["shift"][e].reshape(1, 1, 1, -1), 0.0)
        outs.append(y)
    outs = jnp.stack(outs, axis=1)                               # (B, E, H, W, C)
    combined = jnp.sum(outs * gates[:, :, None, None, None], axis=1)
    exit_p = jax.nn.sigmoid(
        jnp.dot(jnp.mean(combined, axis=(1, 2)), params["ew"],
                precision=lax.Precision.HIGHEST) + params["eb"])[:, 0]
    return combined, exit_p


if __name__ == "__main__":
    key = jax.random.PRNGKey(0)
    kx_key, kg_key, kp_key = jax.random.split(key, 3)

    B, Cin, H, W = 2, 4, 16, 16
    Cout, E = 32, 3

    x = jax.random.normal(kx_key, (B, Cin, H, W), jnp.float32)
    params = make_params(kp_key, Cin, Cout, E)

    # --- MoESelect (the original module) standalone check: GAP -> Linear -> Softmax ---
    xg = jax.random.normal(kg_key, (B, Cout, H, W), jnp.float32)
    gates_k = moe_select(xg, params["gw"], params["gb"])
    gates_r = jax.nn.softmax(
        jnp.dot(jnp.mean(xg, axis=(2, 3)), params["gw"],
                precision=lax.Precision.HIGHEST) + params["gb"], axis=-1)
    assert gates_k.shape == (B, E)
    assert jnp.allclose(gates_k, gates_r, atol=5e-3, rtol=5e-3)

    # --- single recursion step of the fused block vs a pure-JAX reference ---
    x_nhwc = jnp.transpose(x, (0, 2, 3, 1))
    cache_r = jnp.maximum(_ref_conv(x_nhwc, params["w0"])
                          + params["b0"].reshape(1, 1, 1, -1), 0.0)
    comb_r, exit_r = _ref_step(cache_r, params)
    out1, exit1 = dnblock_pallas(x_nhwc, params, max_recursions=1)
    assert jnp.allclose(out1, comb_r, atol=2e-2, rtol=2e-2)     # bf16 expert matmul
    assert jnp.allclose(exit1, exit_r, atol=2e-2, rtol=2e-2)

    # --- full recursive forward with early exit (single fused pallas_call) ---
    out = dnblock_forward(x, params, max_recursions=32)
    jax.block_until_ready(out)
    assert out.shape == (B, Cout, H, W)
    print("KERNEL_OK")
</pallas_src>

<mosaic_0001>
module attributes {stable_mosaic.version = 11 : i64} {
  func.func @moe_select_kernel(%arg0: memref<2x16x16x32xf32, #tpu.memory_space<vmem>>, %arg1: memref<32x3xf32, #tpu.memory_space<vmem>>, %arg2: memref<1x3xf32, #tpu.memory_space<vmem>>, %arg3: memref<2x3xf32, #tpu.memory_space<vmem>>) attributes {dimension_semantics = [], scalar_prefetch = 0 : i64, scratch_operands = 0 : i64, tpu.core_type = #tpu.core_type<tc>} {
    %c0 = arith.constant 0 : index
    %c0_0 = arith.constant 0 : index
    %c0_1 = arith.constant 0 : index
    %c0_2 = arith.constant 0 : index
    %0 = vector.load %arg0[%c0, %c0_0, %c0_1, %c0_2] : memref<2x16x16x32xf32, #tpu.memory_space<vmem>>, vector<2x16x16x32xf32>
    %1 = vector.shape_cast %0 : vector<2x16x16x32xf32> to vector<2x256x32xf32>
    %cst = arith.constant dense<0.000000e+00> : vector<2x32xf32>
    %2 = vector.multi_reduction <add>, %1, %cst [1] : vector<2x256x32xf32> to vector<2x32xf32>
    %cst_3 = arith.constant 3.906250e-03 : f32
    %3 = vector.broadcast %cst_3 : f32 to vector<2x32xf32>
    %4 = arith.mulf %2, %3 : vector<2x32xf32>
    %c0_4 = arith.constant 0 : index
    %c0_5 = arith.constant 0 : index
    %5 = vector.load %arg1[%c0_4, %c0_5] : memref<32x3xf32, #tpu.memory_space<vmem>>, vector<32x3xf32>
    %cst_6 = arith.constant dense<0.000000e+00> : vector<2x3xf32>
    %6 = tpu.matmul %4, %5, %cst_6 {dimension_numbers = #tpu.dot_dimension_numbers<[1], [0], [0], [1], [0, 0, 1, 1], [], []>} : vector<2x32xf32>, vector<32x3xf32>, vector<2x3xf32> -> vector<2x3xf32>
    %c0_7 = arith.constant 0 : index
    %c0_8 = arith.constant 0 : index
    %7 = vector.load %arg2[%c0_7, %c0_8] : memref<1x3xf32, #tpu.memory_space<vmem>>, vector<1x3xf32>
    %8 = vector.broadcast %7 : vector<1x3xf32> to vector<2x3xf32>
    %9 = arith.addf %6, %8 : vector<2x3xf32>
    %cst_9 = arith.constant dense<0xFF800000> : vector<2xf32>
    %10 = vector.multi_reduction <maximumf>, %9, %cst_9 [1] : vector<2x3xf32> to vector<2xf32>
    %11 = vector.shape_cast %10 : vector<2xf32> to vector<2x1xf32>
    %12 = vector.broadcast %11 : vector<2x1xf32> to vector<2x3xf32>
    %13 = arith.subf %9, %12 : vector<2x3xf32>
    %14 = math.exp %13 : vector<2x3xf32>
    %cst_10 = arith.constant dense<0.000000e+00> : vector<2xf32>
    %15 = vector.multi_reduction <add>, %14, %cst_10 [1] : vector<2x3xf32> to vector<2xf32>
    %16 = vector.shape_cast %15 : vector<2xf32> to vector<2x1xf32>
    %17 = vector.broadcast %16 : vector<2x1xf32> to vector<2x3xf32>
    %18 = arith.divf %14, %17 : vector<2x3xf32>
    %c0_11 = arith.constant 0 : index
    %c0_12 = arith.constant 0 : index
    %19 = vector.load %arg3[%c0_11, %c0_12] : memref<2x3xf32, #tpu.memory_space<vmem>>, vector<2x3xf32>
    tpu.vector_store %arg3[%c0_11, %c0_12], %18 {strides = array<i32>} : memref<2x3xf32, #tpu.memory_space<vmem>>, vector<2x3xf32>,
    return
  }
}

</mosaic_0001>

<llo_original>
// kernel: tpu_custom_call.1
$region0: #{tpu_custom_call.1}
  #allocation0 [shape = 'u32[]', space=smem, size = 0x4, offset = 0x4, fixed_abs, tag = 'smem constant byte address 0x4 - core index']
  #allocation1 [shape = 'u32[144,128]{1,0:T(1,128)}', space=vmem, size = 0x12000, scoped, tag = 'internal scratch']
  %s0 = inlined_call_operand.hbm [shape: f32[2,16,16,32], index: 0, kind: input, shape index: {}]
  %s1 = inlined_call_operand.vmem [shape: f32[32,3], index: 1, kind: input, shape index: {}]
  %s2 = inlined_call_operand.vmem [shape: f32[1,3], index: 2, kind: input, shape index: {}]
  %s3 = inlined_call_operand.hbm [shape: f32[2,3], index: 3, kind: output, shape index: {}]
  %s4 = sld [smem:[#allocation0]]
  $region26: #{tpu_custom_call.1} parent=0
    _
  %s6 = ssub.s32 1, %s4
  %s7 = scalar_select 0, %s6, %s4
  $region1: #{tpu_custom_call.1} parent=0
    #allocation2 [shape = 'u8[262144]{0}', space=vmem, size = 0x40000, scoped, tag = 'input window, operand 0, single buffered']
    #allocation3 [shape = 's32[1]{0}', space=sflag, size = 0x4, scoped, tag = 'scoped memory for tpu_custom_call.1']
    #allocation4 [shape = 's32[1]{0}', space=sflag, size = 0x4, scoped, tag = 'scoped memory for tpu_custom_call.1']
    #allocation5 [shape = 'u8[1024]{0}', space=vmem, size = 0x400, scoped, tag = 'output window, operand 0, single buffered']
    %8 = vsyncpa [#allocation3], 0
    %9 = vsyncpa [#allocation4], 0
    // Predicated region
    $region2: #{tpu_custom_call.1} parent=1 // pred_check
      _
    $region3: #{tpu_custom_call.1} parent=1 // pred_check_branch
      %11 = sbr.rel (0) target = $region5
    $region4: #{tpu_custom_call.1} parent=1 // pred_region
      %s13 = ssub.s32 8192, 8192
      %14 = vsyncadd [#allocation3], %s13
      %s15 = sshll.u32 [#allocation2], 4
      %s16 = int_to_ptr.vmem [resolvable:$true] %s15
      %21 = dma.hbm_to_vmem [thread:$0]  %s0, 8192, %s16, [#allocation3], 128, 128, 8
    $region5: #{tpu_custom_call.1} parent=1 // pred_fallthru
      _
    // Predicated region
    $region6: #{tpu_custom_call.1} parent=1 // pred_check
      _
    $region7: #{tpu_custom_call.1} parent=1 // pred_check_branch
      %23 = sbr.rel (0) target = $region9
    $region8: #{tpu_custom_call.1} parent=1 // pred_region
      _
    $region9: #{tpu_custom_call.1} parent=1 // pred_fallthru
      _
    // Predicated region
    $region10: #{tpu_custom_call.1} parent=1 // pred_check
      _
    $region11: #{tpu_custom_call.1} parent=1 // pred_check_branch
      %25 = sbr.rel (0) target = $region13
    $region12: #{tpu_custom_call.1} parent=1 // pred_region
      _
    $region13: #{tpu_custom_call.1} parent=1 // pred_fallthru
      _
    // Predicated region
    $region14: #{tpu_custom_call.1} parent=1 // pred_check
      _
    $region15: #{tpu_custom_call.1} parent=1 // pred_check_branch
      %27 = sbr.rel (0) target = $region17
    $region16: #{tpu_custom_call.1} parent=1 // pred_region
      %28 = dma.done [#allocation3], 8192
    $region17: #{tpu_custom_call.1} parent=1 // pred_fallthru
      _
    %v29 = vld [vmem:[#allocation2] sm:$0xff]
    %v30 = vld [vmem:[#allocation2 + $0x8] sm:$0xff]
    %v31 = vld [vmem:[#allocation2 + $0x10] sm:$0xff]
    %v32 = vld [vmem:[#allocation2 + $0x18] sm:$0xff]
    %v33 = vld [vmem:[#allocation2 + $0x20] sm:$0xff]
    %v34 = vld [vmem:[#allocation2 + $0x28] sm:$0xff]
    %v35 = vld [vmem:[#allocation2 + $0x30] sm:$0xff]
    %v36 = vld [vmem:[#allocation2 + $0x38] sm:$0xff]
    %v37 = vld [vmem:[#allocation2 + $0x40] sm:$0xff]
    %v38 = vld [vmem:[#allocation2 + $0x48] sm:$0xff]
    %v39 = vld [vmem:[#allocation2 + $0x50] sm:$0xff]
    %v40 = vld [vmem:[#allocation2 + $0x58] sm:$0xff]
    %v41 = vld [vmem:[#allocation2 + $0x60] sm:$0xff]
    %v42 = vld [vmem:[#allocation2 + $0x68] sm:$0xff]
    %v43 = vld [vmem:[#allocation2 + $0x70] sm:$0xff]
    %v44 = vld [vmem:[#allocation2 + $0x78] sm:$0xff]
    %v45 = vld [vmem:[#allocation2 + $0x80] sm:$0xff]
    %v46 = vld [vmem:[#allocation2 + $0x88] sm:$0xff]
    %v47 = vld [vmem:[#allocation2 + $0x90] sm:$0xff]
    %v48 = vld [vmem:[#allocation2 + $0x98] sm:$0xff]
    %v49 = vld [vmem:[#allocation2 + $0xa0] sm:$0xff]
    %v50 = vld [vmem:[#allocation2 + $0xa8] sm:$0xff]
    %v51 = vld [vmem:[#allocation2 + $0xb0] sm:$0xff]
    %v52 = vld [vmem:[#allocation2 + $0xb8] sm:$0xff]
    %v53 = vld [vmem:[#allocation2 + $0xc0] sm:$0xff]
    %v54 = vld [vmem:[#allocation2 + $0xc8] sm:$0xff]
    %v55 = vld [vmem:[#allocation2 + $0xd0] sm:$0xff]
    %v56 = vld [vmem:[#allocation2 + $0xd8] sm:$0xff]
    %v57 = vld [vmem:[#allocation2 + $0xe0] sm:$0xff]
    %v58 = vld [vmem:[#allocation2 + $0xe8] sm:$0xff]
    %v59 = vld [vmem:[#allocation2 + $0xf0] sm:$0xff]
    %v60 = vld [vmem:[#allocation2 + $0xf8] sm:$0xff]
    %v61 = vld [vmem:[#allocation2 + $0x100] sm:$0xff]
    %v62 = vld [vmem:[#allocation2 + $0x108] sm:$0xff]
    %v63 = vld [vmem:[#allocation2 + $0x110] sm:$0xff]
    %v64 = vld [vmem:[#allocation2 + $0x118] sm:$0xff]
    %v65 = vld [vmem:[#allocation2 + $0x120] sm:$0xff]
    %v66 = vld [vmem:[#allocation2 + $0x128] sm:$0xff]
    %v67 = vld [vmem:[#allocation2 + $0x130] sm:$0xff]
    %v68 = vld [vmem:[#allocation2 + $0x138] sm:$0xff]
    %v69 = vld [vmem:[#allocation2 + $0x140] sm:$0xff]
    %v70 = vld [vmem:[#allocation2 + $0x148] sm:$0xff]
    %v71 = vld [vmem:[#allocation2 + $0x150] sm:$0xff]
    %v72 = vld [vmem:[#allocation2 + $0x158] sm:$0xff]
    %v73 = vld [vmem:[#allocation2 + $0x160] sm:$0xff]
    %v74 = vld [vmem:[#allocation2 + $0x168] sm:$0xff]
    %v75 = vld [vmem:[#allocation2 + $0x170] sm:$0xff]
    %v76 = vld [vmem:[#allocation2 + $0x178] sm:$0xff]
    %v77 = vld [vmem:[#allocation2 + $0x180] sm:$0xff]
    %v78 = vld [vmem:[#allocation2 + $0x188] sm:$0xff]
    %v79 = vld [vmem:[#allocation2 + $0x190] sm:$0xff]
    %v80 = vld [vmem:[#allocation2 + $0x198] sm:$0xff]
    %v81 = vld [vmem:[#allocation2 + $0x1a0] sm:$0xff]
    %v82 = vld [vmem:[#allocation2 + $0x1a8] sm:$0xff]
    %v83 = vld [vmem:[#allocation2 + $0x1b0] sm:$0xff]
    %v84 = vld [vmem:[#allocation2 + $0x1b8] sm:$0xff]
    %v85 = vld [vmem:[#allocation2 + $0x1c0] sm:$0xff]
    %v86 = vld [vmem:[#allocation2 + $0x1c8] sm:$0xff]
    %v87 = vld [vmem:[#allocation2 + $0x1d0] sm:$0xff]
    %v88 = vld [vmem:[#allocation2 + $0x1d8] sm:$0xff]
    %v89 = vld [vmem:[#allocation2 + $0x1e0] sm:$0xff]
    %v90 = vld [vmem:[#allocation2 + $0x1e8] sm:$0xff]
    %v91 = vld [vmem:[#allocation2 + $0x1f0] sm:$0xff]
    %v92 = vld [vmem:[#allocation2 + $0x1f8] sm:$0xff]
    %vm93 = vcmask 261120
    %v94 = vsel %vm93, %v29, 0.0
    %v95 = vsel %vm93, %v30, 0.0
    %v96 = vadd.f32 %v94, %v95
    %v97 = vsel %vm93, %v31, 0.0
    %v98 = vadd.f32 %v96, %v97
    %v99 = vsel %vm93, %v32, 0.0
    %v100 = vadd.f32 %v98, %v99
    %v101 = vsel %vm93, %v33, 0.0
    %v102 = vadd.f32 %v100, %v101
    %v103 = vsel %vm93, %v34, 0.0
    %v104 = vadd.f32 %v102, %v103
    %v105 = vsel %vm93, %v35, 0.0
    %v106 = vadd.f32 %v104, %v105
    %v107 = vsel %vm93, %v36, 0.0
    %v108 = vadd.f32 %v106, %v107
    %v109 = vsel %vm93, %v37, 0.0
    %v110 = vadd.f32 %v108, %v109
    %v111 = vsel %vm93, %v38, 0.0
    %v112 = vadd.f32 %v110, %v111
    %v113 = vsel %vm93, %v39, 0.0
    %v114 = vadd.f32 %v112, %v113
    %v115 = vsel %vm93, %v40, 0.0
    %v116 = vadd.f32 %v114, %v115
    %v117 = vsel %vm93, %v41, 0.0
    %v118 = vadd.f32 %v116, %v117
    %v119 = vsel %vm93, %v42, 0.0
    %v120 = vadd.f32 %v118, %v119
    %v121 = vsel %vm93, %v43, 0.0
    %v122 = vadd.f32 %v120, %v121
    %v123 = vsel %vm93, %v44, 0.0
    %v124 = vadd.f32 %v122, %v123
    %v125 = vsel %vm93, %v45, 0.0
    %v126 = vadd.f32 %v124, %v125
    %v127 = vsel %vm93, %v46, 0.0
    %v128 = vadd.f32 %v126, %v127
    %v129 = vsel %vm93, %v47, 0.0
    %v130 = vadd.f32 %v128, %v129
    %v131 = vsel %vm93, %v48, 0.0
    %v132 = vadd.f32 %v130, %v131
    %v133 = vsel %vm93, %v49, 0.0
    %v134 = vadd.f32 %v132, %v133
    %v135 = vsel %vm93, %v50, 0.0
    %v136 = vadd.f32 %v134, %v135
    %v137 = vsel %vm93, %v51, 0.0
    %v138 = vadd.f32 %v136, %v137
    %v139 = vsel %vm93, %v52, 0.0
    %v140 = vadd.f32 %v138, %v139
    %v141 = vsel %vm93, %v53, 0.0
    %v142 = vadd.f32 %v140, %v141
    %v143 = vsel %vm93, %v54, 0.0
    %v144 = vadd.f32 %v142, %v143
    %v145 = vsel %vm93, %v55, 0.0
    %v146 = vadd.f32 %v144, %v145
    %v147 = vsel %vm93, %v56, 0.0
    %v148 = vadd.f32 %v146, %v147
    %v149 = vsel %vm93, %v57, 0.0
    %v150 = vadd.f32 %v148, %v149
    %v151 = vsel %vm93, %v58, 0.0
    %v152 = vadd.f32 %v150, %v151
    %v153 = vsel %vm93, %v59, 0.0
    %v154 = vadd.f32 %v152, %v153
    %v155 = vsel %vm93, %v60, 0.0
    %v156 = vadd.f32 %v154, %v155
    %v157 = vrot.slane %v156, 4
    %v158 = vadd.f32 %v156, %v157
    %v159 = vrot.slane %v158, 2
    %v160 = vadd.f32 %v158, %v159
    %v161 = vrot.slane %v160, 1
    %v162 = vadd.f32 %v160, %v161
    %v163 = vsel %vm93, %v61, 0.0
    %v164 = vsel %vm93, %v62, 0.0
    %v165 = vadd.f32 %v163, %v164
    %v166 = vsel %vm93, %v63, 0.0
    %v167 = vadd.f32 %v165, %v166
    %v168 = vsel %vm93, %v64, 0.0
    %v169 = vadd.f32 %v167, %v168
    %v170 = vsel %vm93, %v65, 0.0
    %v171 = vadd.f32 %v169, %v170
    %v172 = vsel %vm93, %v66, 0.0
    %v173 = vadd.f32 %v171, %v172
    %v174 = vsel %vm93, %v67, 0.0
    %v175 = vadd.f32 %v173, %v174
    %v176 = vsel %vm93, %v68, 0.0
    %v177 = vadd.f32 %v175, %v176
    %v178 = vsel %vm93, %v69, 0.0
    %v179 = vadd.f32 %v177, %v178
    %v180 = vsel %vm93, %v70, 0.0
    %v181 = vadd.f32 %v179, %v180
    %v182 = vsel %vm93, %v71, 0.0
    %v183 = vadd.f32 %v181, %v182
    %v184 = vsel %vm93, %v72, 0.0
    %v185 = vadd.f32 %v183, %v184
    %v186 = vsel %vm93, %v73, 0.0
    %v187 = vadd.f32 %v185, %v186
    %v188 = vsel %vm93, %v74, 0.0
    %v189 = vadd.f32 %v187, %v188
    %v190 = vsel %vm93, %v75, 0.0
    %v191 = vadd.f32 %v189, %v190
    %v192 = vsel %vm93, %v76, 0.0
    %v193 = vadd.f32 %v191, %v192
    %v194 = vsel %vm93, %v77, 0.0
    %v195 = vadd.f32 %v193, %v194
    %v196 = vsel %vm93, %v78, 0.0
    %v197 = vadd.f32 %v195, %v196
    %v198 = vsel %vm93, %v79, 0.0
    %v199 = vadd.f32 %v197, %v198
    %v200 = vsel %vm93, %v80, 0.0
    %v201 = vadd.f32 %v199, %v200
    %v202 = vsel %vm93, %v81, 0.0
    %v203 = vadd.f32 %v201, %v202
    %v204 = vsel %vm93, %v82, 0.0
    %v205 = vadd.f32 %v203, %v204
    %v206 = vsel %vm93, %v83, 0.0
    %v207 = vadd.f32 %v205, %v206
    %v208 = vsel %vm93, %v84, 0.0
    %v209 = vadd.f32 %v207, %v208
    %v210 = vsel %vm93, %v85, 0.0
    %v211 = vadd.f32 %v209, %v210
    %v212 = vsel %vm93, %v86, 0.0
    %v213 = vadd.f32 %v211, %v212
    %v214 = vsel %vm93, %v87, 0.0
    %v215 = vadd.f32 %v213, %v214
    %v216 = vsel %vm93, %v88, 0.0
    %v217 = vadd.f32 %v215, %v216
    %v218 = vsel %vm93, %v89, 0.0
    %v219 = vadd.f32 %v217, %v218
    %v220 = vsel %vm93, %v90, 0.0
    %v221 = vadd.f32 %v219, %v220
    %v222 = vsel %vm93, %v91, 0.0
    %v223 = vadd.f32 %v221, %v222
    %v224 = vsel %vm93, %v92, 0.0
    %v225 = vadd.f32 %v223, %v224
    %v226 = vrot.slane %v225, 4
    %v227 = vadd.f32 %v225, %v226
    %v228 = vrot.slane %v227, 2
    %v229 = vadd.f32 %v227, %v228
    %v230 = vrot.slane %v229, 1
    %v231 = vadd.f32 %v229, %v230
    %v232 = vmul.f32 %v162, 0.00390625
    %v233 = vmul.f32 %v231, 0.00390625
    %v234 = vld [vmem:[%s1] sm:$0xff]
    %v235 = vld [vmem:[%s1 + $0x8] sm:$0xff]
    %v236 = vld [vmem:[%s1 + $0x10] sm:$0xff]
    %v237 = vld [vmem:[%s1 + $0x18] sm:$0xff]
    %v238 = vld [vmem:[%s2] sm:$0x1]
    %v240 = vlaneseq
    %v241 = vshrl.u32 %v240, 7
    %v242 = vsub.s32 0, %v241
    %v243 = vrot.slane %v238, %v242
    %vm247 = vcmask 1041409
    %v248 = vsel %vm247, %v233, %v232
    %v249 = vsel %vm93, %v248, 0
    %251 = vmatprep.subr.mxu0 0.0
    %252 = vmatpush1.msra.mxu0 %v234
    %253 = vmatprep.subr.mxu0 0.0
    %254 = vmatpush1.msra.mxu0 %v235
    %255 = vmatprep.subr.mxu0 0.0
    %256 = vmatpush1.msra.mxu0 %v236
    %257 = vmatprep.subr.mxu0 0.0
    %258 = vmatpush1.msra.mxu0 %v237
    %259 = vmatprep.subr.mxu0 0.0
    %260 = vmatpush1.msra.mxu0 0.0
    %261 = vmatprep.subr.mxu0 0.0
    %262 = vmatpush1.msra.mxu0 0.0
    %263 = vmatprep.subr.mxu0 0.0
    %264 = vmatpush1.msra.mxu0 0.0
    %265 = vmatprep.subr.mxu0 0.0
    %266 = vmatpush1.msra.mxu0 0.0
    %267 = vmatprep.subr.mxu0 0.0
    %268 = vmatpush1.msra.mxu0 0.0
    %269 = vmatprep.subr.mxu0 0.0
    %270 = vmatpush1.msra.mxu0 0.0
    %271 = vmatprep.subr.mxu0 0.0
    %272 = vmatpush1.msra.mxu0 0.0
    %273 = vmatprep.subr.mxu0 0.0
    %274 = vmatpush1.msra.mxu0 0.0
    %275 = vmatprep.subr.mxu0 0.0
    %276 = vmatpush1.msra.mxu0 0.0
    %277 = vmatprep.subr.mxu0 0.0
    %278 = vmatpush1.msra.mxu0 0.0
    %279 = vmatprep.subr.mxu0 0.0
    %280 = vmatpush1.msra.mxu0 0.0
    %281 = vmatprep.subr.mxu0 0.0
    %282 = vmatpush1.msra.mxu0 0.0
    %283 = vmatprep.subr.mxu0 0.0
    %284 = vmatpush1.msra.mxu0 0.0
    %285 = vmatprep.subr.mxu0 0.0
    %286 = vmatpush1.msra.mxu0 0.0
    %287 = vmatprep.subr.mxu0 0.0
    %288 = vmatpush1.msra.mxu0 0.0
    %289 = vmatprep.subr.mxu0 0.0
    %290 = vmatpush1.msra.mxu0 0.0
    %291 = vmatprep.subr.mxu0 0.0
    %292 = vmatpush1.msra.mxu0 0.0
    %293 = vmatprep.subr.mxu0 0.0
    %294 = vmatpush1.msra.mxu0 0.0
    %295 = vmatprep.subr.mxu0 0.0
    %296 = vmatpush1.msra.mxu0 0.0
    %297 = vmatprep.subr.mxu0 0.0
    %298 = vmatpush1.msra.mxu0 0.0
    %299 = vmatprep.subr.mxu0 0.0
    %300 = vmatpush1.msra.mxu0 0.0
    %301 = vmatprep.subr.mxu0 0.0
    %302 = vmatpush1.msra.mxu0 0.0
    %303 = vmatprep.subr.mxu0 0.0
    %304 = vmatpush1.msra.mxu0 0.0
    %305 = vmatprep.subr.mxu0 0.0
    %306 = vmatpush1.msra.mxu0 0.0
    %307 = vmatprep.subr.mxu0 0.0
    %308 = vmatpush1.msra.mxu0 0.0
    %309 = vmatprep.subr.mxu0 0.0
    %310 = vmatpush1.msra.mxu0 0.0
    %311 = vmatprep.subr.mxu0 0.0
    %312 = vmatpush1.msra.mxu0 0.0
    %313 = vmatprep.subr.mxu0 0.0
    %314 = vmatpush1.msra.mxu0 0.0
    %315 = vmatprep.mubr.f32.mxu0 0.0
    %316 = vmatmul.mubr.f32.gmra.mrb[0].mxu0 %v249
    %v317 = vpop.f32.mrb[0].mxu0
    %v318 = vadd.f32 %v243, %v317
    %v319 = vpop.f32.mrb[0].mxu0
    %320 = vdwg.mxu0
    %vm321 = vcmask 17408
    %v322 = vsel %vm321, %v318, -inf
    %323 = vmax.xlane.f32.xlu0 %v322
    %v324 = vpop.xlane.xlu0 %323
    %v325 = vsub.f32 %v318, %v324
    %v326 = vmul.f32 %v325, 1.442695
    %v327 = vpow.pop %v326
    %v328 = vsel %vm321, %v327, 0.0
    %329 = vadd.xlane.f32.xlu0 %v328
    %v330 = vpop.xlane.xlu0 %329
    %v331 = vrcp.pop %v330
    %v332 = vmul.f32 %v327, %v331
    %333 = vst.msk [vmem:[#allocation5] sm:$0x3] %vm321, %v332
    // Predicated region
    $region18: #{tpu_custom_call.1} parent=1 // pred_check
      _
    $region19: #{tpu_custom_call.1} parent=1 // pred_check_branch
      %335 = sbr.rel (0) target = $region21
    $region20: #{tpu_custom_call.1} parent=1 // pred_region
      %s337 = ssub.s32 32, 32
      %338 = vsyncadd [#allocation4], %s337
      %s340 = sshll.u32 [#allocation5], 4
      %s341 = int_to_ptr.vmem [resolvable:$true] %s340
      %343 = dma.vmem_to_hbm [thread:$0]  %s341, 32, %s3, [#allocation4]
    $region21: #{tpu_custom_call.1} parent=1 // pred_fallthru
      _
    // Predicated region
    $region22: #{tpu_custom_call.1} parent=1 // pred_check
      _
    $region23: #{tpu_custom_call.1} parent=1 // pred_check_branch
      %345 = sbr.rel (0) target = $region25
    $region24: #{tpu_custom_call.1} parent=1 // pred_region
      %346 = dma.done [#allocation4], 32
    $region25: #{tpu_custom_call.1} parent=1 // pred_fallthru
      _
    %347 = vsyncpa [#allocation3], 1
    %348 = vsyncpa [#allocation4], 1

</llo_original>
